<compile_context>
chip_gen: v6e
topology: v6e:2x2x1
jax: 0.10.0
libtpu: 0.0.40
codegen_flags: <defaults>
</compile_context>

<pallas_src>
import numpy as np
import jax
import jax.numpy as jnp
from jax.experimental import pallas as pl
from jax.experimental.pallas import tpu as pltpu


def _round_up(a, b):
    return ((a + b - 1) // b) * b


def _tensorcores_per_chip():
    # Only v7x has 2 TensorCores per chip; v5e/v6e have 1.
    try:
        kind = jax.devices()[0].device_kind.lower()
    except Exception:
        return 1
    return 2 if ("v7" in kind or "7x" in kind) else 1


# ---------------------------------------------------------------------------
# Pallas kernel: fused  out = X @ W^T + bias   (tiled over the batch dim)
# ---------------------------------------------------------------------------
def _matmul_bias_kernel(x_ref, wt_ref, b_ref, o_ref):
    acc = jnp.dot(x_ref[...], wt_ref[...], preferred_element_type=jnp.float32)
    o_ref[...] = (acc + b_ref[...]).astype(o_ref.dtype)


def prepare_kernel_params(w_full, bias_full, x_dtype):
    """One-time glue: build (K, N) W^T in the activation dtype and (1, N) f32 bias."""
    wt = jnp.asarray(w_full, jnp.float32).T.astype(x_dtype)       # (K, N)
    b = jnp.asarray(bias_full, jnp.float32).reshape(1, -1)        # (1, N)
    return wt, b


def equivariant_forward(x, wt, bias_row, tm=4096, out_dtype=jnp.float32):
    """x: (M, K); wt: (K, N) prebuilt W^T; bias_row: (1, N) f32 -> (M, N)."""
    M, K = x.shape
    K2, N = wt.shape
    assert K == K2 and bias_row.shape == (1, N)

    # Batch tile: multiple of 8, as big as requested; no host-side padding of
    # X (Pallas masks the partial last output block).
    tm_eff = max(8, min(int(tm), _round_up(M, 8)))
    if _tensorcores_per_chip() >= 2 and M > 8:
        # v7x only: ensure an even number (>=2) of grid steps so the
        # "parallel" batch axis splits evenly across both TensorCores.
        steps = pl.cdiv(M, tm_eff)
        even_steps = max(2, 2 * ((steps + 1) // 2))
        tm_eff = max(8, min(tm_eff, _round_up(-(-M // even_steps), 8)))
    grid = (pl.cdiv(M, tm_eff),)

    out_itemsize = jnp.dtype(out_dtype).itemsize
    cost = pl.CostEstimate(
        flops=2 * M * K * N,
        transcendentals=0,
        bytes_accessed=int(x.size * x.dtype.itemsize
                           + wt.size * wt.dtype.itemsize
                           + bias_row.size * 4
                           + M * N * out_itemsize),
    )

    return pl.pallas_call(
        _matmul_bias_kernel,
        out_shape=jax.ShapeDtypeStruct((M, N), out_dtype),
        grid_spec=pltpu.PrefetchScalarGridSpec(
            num_scalar_prefetch=0,
            grid=grid,
            in_specs=[
                pl.BlockSpec((tm_eff, K), lambda i: (i, 0)),  # X tile
                pl.BlockSpec((K, N), lambda i: (0, 0)),       # whole W^T (tiny, resident)
                pl.BlockSpec((1, N), lambda i: (0, 0)),       # bias row
            ],
            out_specs=pl.BlockSpec((tm_eff, N), lambda i: (i, 0)),
        ),
        compiler_params=pltpu.CompilerParams(
            dimension_semantics=("parallel",)),
        cost_estimate=cost,
    )(x, wt, bias_row)


# ---------------------------------------------------------------------------
# Parameter / equivariant weight-matrix construction (plain JAX glue)
# ---------------------------------------------------------------------------
def irrep_weight_matrix(weights_list, patterns_list, out_channels):
    """Replicates EquivariantAll2IrrepFlattened.weight_matrix()."""
    degree = patterns_list[0].shape[0]
    blocks = []
    for w, pat in zip(weights_list, patterns_list):
        in_ch = w.shape[1]
        feats = pat.shape[1]
        if w.size == 0:
            blocks.append(jnp.zeros((out_channels * degree, in_ch * feats),
                                    jnp.float32))
            continue
        pat_j = jnp.asarray(pat)
        sign = jnp.sign(pat_j).astype(jnp.float32)               # (degree, feats)
        gathered = w[..., jnp.abs(pat_j) - 1]                     # (O, C, degree, feats)
        signed = sign[None, None, ...] * gathered                 # (O, C, degree, feats)
        wm = jnp.transpose(signed, (2, 0, 3, 1))                  # (degree, O, feats, C)
        wm = wm.reshape(out_channels * degree, feats * in_ch)
        blocks.append(wm)
    return jnp.concatenate(blocks, axis=1)


def irrep_bias_vector(biases, signed, degree, out_channels):
    """Replicates EquivariantAll2IrrepFlattened.bias_vector() (zeros if signed)."""
    if signed:
        return jnp.zeros((out_channels * degree,), jnp.float32)
    return jnp.tile(biases, degree)


def kaiming_uniform(key, shape):
    # PyTorch nn.init.kaiming_uniform_ (a=0) on a 3D (O, C, P) tensor:
    # fan_in = C * P, bound = sqrt(6 / fan_in)
    fan_in = shape[1] * shape[2]
    bound = np.sqrt(6.0 / fan_in)
    return jax.random.uniform(key, shape, jnp.float32, -bound, bound)


# ---------------------------------------------------------------------------
# Main
# ---------------------------------------------------------------------------
if __name__ == "__main__":
    rng = np.random.default_rng(0)
    key = jax.random.PRNGKey(0)

    # Module configuration (small, deterministic).
    batch = 200                    # exercises multiple tiles + a partial block
    out_channels = 4
    degree = 4
    in_channels_list = [4, 3]      # channels of the previous layers
    feats_list = [6, 4]            # features per previous layer
    pmax_list = [5, 3]             # number of independent weights per pattern
    agg_ch_feats = sum(c * f for c, f in zip(in_channels_list, feats_list))  # 36

    # Irrep 0: unsigned patterns (has bias); Irrep 1: signed patterns (no bias).
    def make_pattern(pmax, feats, signed):
        absvals = rng.integers(1, pmax + 1, size=(degree, feats))
        absvals[0, 0] = pmax                       # ensure pattern.max() == pmax
        if signed:
            signs = rng.choice(np.array([-1, 1]), size=(degree, feats))
            pat = absvals * signs
            pat[0, 1] = -max(1, abs(pat[0, 1]))    # ensure pattern.min() < 0
            pat[0, 0] = pmax                       # keep max positive
            return pat.astype(np.int32)
        return absvals.astype(np.int32)

    weight_patterns = [
        [make_pattern(pmax_list[l], feats_list[l], signed=False)
         for l in range(len(in_channels_list))],   # irrep 0 (unsigned)
        [make_pattern(pmax_list[l], feats_list[l], signed=True)
         for l in range(len(in_channels_list))],   # irrep 1 (signed)
    ]

    # Parameters: kaiming-uniform weights, zero biases (matches the PyTorch
    # __init__, which never re-initializes `biases` away from torch.zeros).
    irrep_weights = []
    irrep_biases = []
    irrep_signed = []
    for i, patterns in enumerate(weight_patterns):
        ws = []
        for l, (in_ch, pat) in enumerate(zip(in_channels_list, patterns)):
            key, sub = jax.random.split(key)
            ws.append(kaiming_uniform(sub, (out_channels, in_ch, int(pat.max()))))
        irrep_weights.append(ws)
        signed = bool(np.min(patterns[0]) < 0)
        irrep_signed.append(signed)
        irrep_biases.append(jnp.zeros((out_channels,), jnp.float32))

    # Full equivariant weight matrix / bias vector (concat over irreps, dim 0).
    W_full = jnp.concatenate(
        [irrep_weight_matrix(ws, ps, out_channels)
         for ws, ps in zip(irrep_weights, weight_patterns)], axis=0)
    b_full = jnp.concatenate(
        [irrep_bias_vector(b, s, degree, out_channels)
         for b, s in zip(irrep_biases, irrep_signed)], axis=0)

    # Input: activations streamed in bf16 (halves the HBM bytes of the
    # dominant X stream); reference math done from the same quantized values.
    key, sub = jax.random.split(key)
    X_f32 = jax.random.normal(sub, (batch, agg_ch_feats), jnp.float32)
    X_bf16 = X_f32.astype(jnp.bfloat16)

    # One-time parameter glue (hoisted out of the forward path).
    wt, b_row = prepare_kernel_params(W_full, b_full, X_bf16.dtype)

    # Pallas kernel forward (default large tile).
    out = equivariant_forward(X_bf16, wt, b_row)
    out = jax.block_until_ready(out)
    out_np = np.asarray(out, np.float32)

    N_out = len(weight_patterns) * out_channels * degree
    assert out.shape == (batch, N_out)

    # Tight check: same bf16-quantized operands, f32 accumulation (numpy).
    Xq = np.asarray(X_bf16).astype(np.float32)
    Wq = np.asarray(W_full.astype(jnp.bfloat16)).astype(np.float32)
    bf = np.asarray(b_full, np.float32)
    ref_q = Xq @ Wq.T + bf[None, :]
    np.testing.assert_allclose(out_np, ref_q, rtol=1e-4, atol=1e-4)

    # Loose semantic check against the full-precision PyTorch-equivalent math.
    ref_f32 = np.asarray(X_f32) @ np.asarray(W_full, np.float32).T + bf[None, :]
    np.testing.assert_allclose(out_np, ref_f32, rtol=5e-2, atol=1e-1)

    # Multi-tile / partial-block path: same result with a small batch tile.
    out_small = jax.block_until_ready(equivariant_forward(X_bf16, wt, b_row, tm=64))
    np.testing.assert_allclose(np.asarray(out_small, np.float32), ref_q,
                               rtol=1e-4, atol=1e-4)

    # Optional bf16 output path (halves output HBM bytes if downstream tolerates it).
    out_bf16 = jax.block_until_ready(
        equivariant_forward(X_bf16, wt, b_row, out_dtype=jnp.bfloat16))
    np.testing.assert_allclose(np.asarray(out_bf16, np.float32), ref_q,
                               rtol=2e-2, atol=2e-2)

    print("KERNEL_OK")
</pallas_src>

<mosaic_0001>
module attributes {stable_mosaic.version = 11 : i64} {
  func.func @_matmul_bias_kernel(%arg0: i32, %arg1: memref<200x36xbf16, #tpu.memory_space<vmem>>, %arg2: memref<36x32xbf16, #tpu.memory_space<vmem>>, %arg3: memref<1x32xf32, #tpu.memory_space<vmem>>, %arg4: memref<200x32xf32, #tpu.memory_space<vmem>>) attributes {dimension_semantics = [#tpu.dimension_semantics<parallel>], iteration_bounds = array<i64: 1>, scalar_prefetch = 0 : i64, scratch_operands = 0 : i64, tpu.core_type = #tpu.core_type<tc>, window_params = [{transform_indices = @transform_0, window_bounds = array<i64: 200, 36>}, {pipeline_mode = #tpu.pipeline_mode<synchronous>, transform_indices = @transform_1, window_bounds = array<i64: 36, 32>}, {pipeline_mode = #tpu.pipeline_mode<synchronous>, transform_indices = @transform_2, window_bounds = array<i64: 1, 32>}, {transform_indices = @transform_3, window_bounds = array<i64: 200, 32>}]} {
    %c0 = arith.constant 0 : index
    %c0_0 = arith.constant 0 : index
    %0 = vector.load %arg1[%c0, %c0_0] : memref<200x36xbf16, #tpu.memory_space<vmem>>, vector<200x36xbf16>
    %c0_1 = arith.constant 0 : index
    %c0_2 = arith.constant 0 : index
    %1 = vector.load %arg2[%c0_1, %c0_2] : memref<36x32xbf16, #tpu.memory_space<vmem>>, vector<36x32xbf16>
    %cst = arith.constant dense<0.000000e+00> : vector<200x32xf32>
    %2 = tpu.matmul %0, %1, %cst {dimension_numbers = #tpu.dot_dimension_numbers<[1], [0], [0], [1], [0, 0, 1, 1], [], []>} : vector<200x36xbf16>, vector<36x32xbf16>, vector<200x32xf32> -> vector<200x32xf32>
    %c0_3 = arith.constant 0 : index
    %c0_4 = arith.constant 0 : index
    %3 = vector.load %arg3[%c0_3, %c0_4] : memref<1x32xf32, #tpu.memory_space<vmem>>, vector<1x32xf32>
    %4 = vector.broadcast %3 : vector<1x32xf32> to vector<200x32xf32>
    %5 = arith.addf %2, %4 : vector<200x32xf32>
    %c0_5 = arith.constant 0 : index
    %c0_6 = arith.constant 0 : index
    %6 = vector.load %arg4[%c0_5, %c0_6] : memref<200x32xf32, #tpu.memory_space<vmem>>, vector<200x32xf32>
    tpu.vector_store %arg4[%c0_5, %c0_6], %5 {strides = array<i32>} : memref<200x32xf32, #tpu.memory_space<vmem>>, vector<200x32xf32>,
    return
  }
  func.func @transform_0(%arg0: i32) -> (i32, i32) {
    %c0_i32 = arith.constant 0 : i32
    %c0_i32_0 = arith.constant 0 : i32
    return %arg0, %c0_i32 : i32, i32
  }
  func.func @transform_1(%arg0: i32) -> (i32, i32) {
    %c0_i32 = arith.constant 0 : i32
    %c0_i32_0 = arith.constant 0 : i32
    %c0_i32_1 = arith.constant 0 : i32
    return %c0_i32, %c0_i32_0 : i32, i32
  }
  func.func @transform_2(%arg0: i32) -> (i32, i32) {
    %c0_i32 = arith.constant 0 : i32
    %c0_i32_0 = arith.constant 0 : i32
    %c0_i32_1 = arith.constant 0 : i32
    return %c0_i32, %c0_i32_0 : i32, i32
  }
  func.func @transform_3(%arg0: i32) -> (i32, i32) {
    %c0_i32 = arith.constant 0 : i32
    %c0_i32_0 = arith.constant 0 : i32
    return %arg0, %c0_i32 : i32, i32
  }
}

</mosaic_0001>

<llo_original>
// kernel: tpu_custom_call.1
$region0: #{tpu_custom_call.1}
  #allocation0 [shape = 'u32[]', space=smem, size = 0x4, offset = 0x4, fixed_abs, tag = 'smem constant byte address 0x4 - core index']
  #allocation1 [shape = 'u32[144,128]{1,0:T(1,128)}', space=vmem, size = 0x12000, scoped, tag = 'internal scratch']
  %s0 = inlined_call_operand.vmem [shape: bf16[200,36], index: 0, kind: input, shape index: {}]
  %s1 = inlined_call_operand.vmem [shape: bf16[36,32], index: 1, kind: input, shape index: {}]
  %s2 = inlined_call_operand.vmem [shape: f32[1,32], index: 2, kind: input, shape index: {}]
  %s3 = inlined_call_operand.vmem [shape: f32[200,32], index: 3, kind: output, shape index: {}]
  %s4 = sld [smem:[#allocation0]]
  $region22: #{tpu_custom_call.1} parent=0
    _
  %s6 = ssub.s32 1, %s4
  %s7 = scalar_select 0, %s6, %s4
  // Predicated region
  $region2: #{tpu_custom_call.1} parent=0 // pred_check
    _
  $region3: #{tpu_custom_call.1} parent=0 // pred_check_branch
    %9 = sbr.rel (0) target = $region5
  $region4: #{tpu_custom_call.1} parent=0 // pred_region
    _
  $region5: #{tpu_custom_call.1} parent=0 // pred_fallthru
    _
  // Predicated region
  $region6: #{tpu_custom_call.1} parent=0 // pred_check
    _
  $region7: #{tpu_custom_call.1} parent=0 // pred_check_branch
    %11 = sbr.rel (0) target = $region9
  $region8: #{tpu_custom_call.1} parent=0 // pred_region
    _
  $region9: #{tpu_custom_call.1} parent=0 // pred_fallthru
    _
  // Predicated region
  $region10: #{tpu_custom_call.1} parent=0 // pred_check
    _
  $region11: #{tpu_custom_call.1} parent=0 // pred_check_branch
    %13 = sbr.rel (0) target = $region13
  $region12: #{tpu_custom_call.1} parent=0 // pred_region
    _
  $region13: #{tpu_custom_call.1} parent=0 // pred_fallthru
    _
  %v15 = vld [vmem:[%s0] sm:$0xf]
  %v16 = vld [vmem:[%s0 + $0x4] sm:$0xf]
  %v17 = vld [vmem:[%s0 + $0x8] sm:$0xf]
  %v18 = vld [vmem:[%s0 + $0xc] sm:$0xf]
  %v19 = vld [vmem:[%s0 + $0x10] sm:$0xf]
  %v20 = vld [vmem:[%s0 + $0x14] sm:$0xf]
  %v21 = vld [vmem:[%s0 + $0x18] sm:$0xf]
  %v22 = vld [vmem:[%s0 + $0x1c] sm:$0xf]
  %v23 = vld [vmem:[%s0 + $0x20] sm:$0xf]
  %v24 = vld [vmem:[%s0 + $0x24] sm:$0xf]
  %v25 = vld [vmem:[%s0 + $0x28] sm:$0xf]
  %v26 = vld [vmem:[%s0 + $0x2c] sm:$0xf]
  %v27 = vld [vmem:[%s0 + $0x30] sm:$0xf]
  %v28 = vld [vmem:[%s0 + $0x34] sm:$0xf]
  %v29 = vld [vmem:[%s0 + $0x38] sm:$0xf]
  %v30 = vld [vmem:[%s0 + $0x3c] sm:$0xf]
  %v31 = vld [vmem:[%s0 + $0x40] sm:$0xf]
  %v32 = vld [vmem:[%s0 + $0x44] sm:$0xf]
  %v33 = vld [vmem:[%s0 + $0x48] sm:$0xf]
  %v34 = vld [vmem:[%s0 + $0x4c] sm:$0xf]
  %v35 = vld [vmem:[%s0 + $0x50] sm:$0xf]
  %v36 = vld [vmem:[%s0 + $0x54] sm:$0xf]
  %v37 = vld [vmem:[%s0 + $0x58] sm:$0xf]
  %v38 = vld [vmem:[%s0 + $0x5c] sm:$0xf]
  %v39 = vld [vmem:[%s0 + $0x60] sm:$0xf]
  %v40 = vld [vmem:[%s1] sm:$0xf]
  %v41 = vld [vmem:[%s1 + $0x4] sm:$0xf]
  %v42 = vld [vmem:[%s1 + $0x8] sm:$0xf]
  %v43 = vld [vmem:[%s1 + $0xc] sm:$0xf]
  %v44 = vld [vmem:[%s1 + $0x10] sm:$0x3]
  %v45 = vld [vmem:[%s2] sm:$0x1]
  %v47 = vlaneseq
  %v48 = vshrl.u32 %v47, 7
  %v49 = vsub.s32 0, %v48
  %v50 = vrot.slane %v45, %v49
  %v77 = vunpack.c.l.b16 %v15
  %v78 = vunpack.c.l.b16 %v16
  %v79 = vunpack.c.l.b16 %v17
  %v80 = vunpack.c.l.b16 %v18
  %v81 = vunpack.c.l.b16 %v19
  %v82 = vunpack.c.l.b16 %v20
  %v83 = vunpack.c.l.b16 %v21
  %v84 = vunpack.c.l.b16 %v22
  %v85 = vunpack.c.l.b16 %v23
  %v86 = vunpack.c.l.b16 %v24
  %v87 = vunpack.c.l.b16 %v25
  %v88 = vunpack.c.l.b16 %v26
  %v89 = vunpack.c.l.b16 %v27
  %v90 = vunpack.c.l.b16 %v28
  %v91 = vunpack.c.l.b16 %v29
  %v92 = vunpack.c.l.b16 %v30
  %v93 = vunpack.c.l.b16 %v31
  %v94 = vunpack.c.l.b16 %v32
  %v95 = vunpack.c.l.b16 %v33
  %v96 = vunpack.c.l.b16 %v34
  %v97 = vunpack.c.l.b16 %v35
  %v98 = vunpack.c.l.b16 %v36
  %v99 = vunpack.c.l.b16 %v37
  %v100 = vunpack.c.l.b16 %v38
  %v101 = vunpack.c.l.b16 %v39
  %v102 = vpack.c.b16 %v78, %v77
  %v103 = vpack.c.b16 %v80, %v79
  %v104 = vpack.c.b16 %v82, %v81
  %v105 = vpack.c.b16 %v84, %v83
  %v106 = vpack.c.b16 %v86, %v85
  %v107 = vpack.c.b16 %v88, %v87
  %v108 = vpack.c.b16 %v90, %v89
  %v109 = vpack.c.b16 %v92, %v91
  %v110 = vpack.c.b16 %v94, %v93
  %v111 = vpack.c.b16 %v96, %v95
  %v112 = vpack.c.b16 %v98, %v97
  %v113 = vpack.c.b16 %v100, %v99
  %v114 = vpack.c.b16 %v101, %v101
  %v120 = vunpack.c.l.b16 %v40
  %v121 = vunpack.c.l.b16 %v41
  %v122 = vunpack.c.l.b16 %v42
  %v123 = vunpack.c.l.b16 %v43
  %v124 = vunpack.c.l.b16 %v44
  %v125 = vpack.c.b16 %v121, %v120
  %v126 = vpack.c.b16 %v123, %v122
  %v127 = vpack.c.b16 %v124, %v124
  %vm130 = vcmask 293888
  %v132 = vsel %vm130, %v102, 0
  %v135 = vsel %vm130, %v103, 0
  %v138 = vsel %vm130, %v104, 0
  %v141 = vsel %vm130, %v105, 0
  %v144 = vsel %vm130, %v106, 0
  %v147 = vsel %vm130, %v107, 0
  %v150 = vsel %vm130, %v108, 0
  %v153 = vsel %vm130, %v109, 0
  %v156 = vsel %vm130, %v110, 0
  %v159 = vsel %vm130, %v111, 0
  %v162 = vsel %vm130, %v112, 0
  %v165 = vsel %vm130, %v113, 0
  %v168 = vsel %vm130, %v114, 0
  %vm170 = vcmask 1041408
  %v172 = vsel %vm170, %v127, 0
  %174 = vmatprep.subr.bf16.mxu0 0
  %175 = vmatpush1.bf16.msra.mxu0 0
  %176 = vmatprep.subr.bf16.mxu0 0
  %177 = vmatpush1.bf16.msra.mxu0 0
  %178 = vmatprep.subr.bf16.mxu0 0
  %179 = vmatpush1.bf16.msra.mxu0 0
  %180 = vmatprep.subr.bf16.mxu0 0
  %181 = vmatpush1.bf16.msra.mxu0 0
  %182 = vmatprep.subr.bf16.mxu0 0
  %183 = vmatpush1.bf16.msra.mxu0 0
  %184 = vmatprep.subr.bf16.mxu0 0
  %185 = vmatpush1.bf16.msra.mxu0 %v172
  %186 = vmatprep.subr.bf16.mxu0 0
  %187 = vmatpush1.bf16.msra.mxu0 %v126
  %188 = vmatprep.subr.bf16.mxu0 0
  %189 = vmatpush1.bf16.msra.mxu0 %v125
  %190 = vmatprep.subr.bf16.mxu0 0
  %191 = vmatpush2.bf16.msra.mxu0 0
  %192 = vmatprep.subr.bf16.mxu0 0
  %193 = vmatpush2.bf16.msra.mxu0 0
  %194 = vmatprep.subr.bf16.mxu0 0
  %195 = vmatpush2.bf16.msra.mxu0 0
  %196 = vmatprep.subr.bf16.mxu0 0
  %197 = vmatpush2.bf16.msra.mxu0 0
  %198 = vmatprep.subr.bf16.mxu0 0
  %199 = vmatpush2.bf16.msra.mxu0 0
  %200 = vmatprep.subr.bf16.mxu0 0
  %201 = vmatpush2.bf16.msra.mxu0 0
  %202 = vmatprep.subr.bf16.mxu0 0
  %203 = vmatpush2.bf16.msra.mxu0 0
  %204 = vmatprep.subr.bf16.mxu0 0
  %205 = vmatpush2.bf16.msra.mxu0 0
  %206 = vmatprep.mubr.bf16.mxu0 0
  %207 = vmatmul.mubr.bf16.gmra.mxu0 %v132
  %v208 = vpop.f32.mrf.mxu0
  %v209 = vadd.f32 %v50, %v208
  %v210 = vpop.f32.mrf.mxu0
  %v211 = vpop.f32.mrf.mxu0
  %v212 = vadd.f32 %v50, %v211
  %v213 = vpop.f32.mrf.mxu0
  %214 = vmatprep.mubr.bf16.mxu0 0
  %215 = vmatmul.mubr.bf16.gmra.mxu0 %v135
  %v216 = vpop.f32.mrf.mxu0
  %v217 = vadd.f32 %v50, %v216
  %v218 = vpop.f32.mrf.mxu0
  %v219 = vpop.f32.mrf.mxu0
  %v220 = vadd.f32 %v50, %v219
  %v221 = vpop.f32.mrf.mxu0
  %222 = vmatprep.mubr.bf16.mxu0 0
  %223 = vmatmul.mubr.bf16.gmra.mxu0 %v138
  %v224 = vpop.f32.mrf.mxu0
  %v225 = vadd.f32 %v50, %v224
  %v226 = vpop.f32.mrf.mxu0
  %v227 = vpop.f32.mrf.mxu0
  %v228 = vadd.f32 %v50, %v227
  %v229 = vpop.f32.mrf.mxu0
  %230 = vmatprep.mubr.bf16.mxu0 0
  %231 = vmatmul.mubr.bf16.gmra.mxu0 %v141
  %v232 = vpop.f32.mrf.mxu0
  %v233 = vadd.f32 %v50, %v232
  %v234 = vpop.f32.mrf.mxu0
  %v235 = vpop.f32.mrf.mxu0
  %v236 = vadd.f32 %v50, %v235
  %v237 = vpop.f32.mrf.mxu0
  %238 = vmatprep.mubr.bf16.mxu0 0
  %239 = vmatmul.mubr.bf16.gmra.mxu0 %v144
  %v240 = vpop.f32.mrf.mxu0
  %v241 = vadd.f32 %v50, %v240
  %v242 = vpop.f32.mrf.mxu0
  %v243 = vpop.f32.mrf.mxu0
  %v244 = vadd.f32 %v50, %v243
  %v245 = vpop.f32.mrf.mxu0
  %246 = vmatprep.mubr.bf16.mxu0 0
  %247 = vmatmul.mubr.bf16.gmra.mxu0 %v147
  %v248 = vpop.f32.mrf.mxu0
  %v249 = vadd.f32 %v50, %v248
  %v250 = vpop.f32.mrf.mxu0
  %v251 = vpop.f32.mrf.mxu0
  %v252 = vadd.f32 %v50, %v251
  %v253 = vpop.f32.mrf.mxu0
  %254 = vmatprep.mubr.bf16.mxu0 0
  %255 = vmatmul.mubr.bf16.gmra.mxu0 %v150
  %v256 = vpop.f32.mrf.mxu0
  %v257 = vadd.f32 %v50, %v256
  %v258 = vpop.f32.mrf.mxu0
  %v259 = vpop.f32.mrf.mxu0
  %v260 = vadd.f32 %v50, %v259
  %v261 = vpop.f32.mrf.mxu0
  %262 = vmatprep.mubr.bf16.mxu0 0
  %263 = vmatmul.mubr.bf16.gmra.mxu0 %v153
  %v264 = vpop.f32.mrf.mxu0
  %v265 = vadd.f32 %v50, %v264
  %v266 = vpop.f32.mrf.mxu0
  %v267 = vpop.f32.mrf.mxu0
  %v268 = vadd.f32 %v50, %v267
  %v269 = vpop.f32.mrf.mxu0
  %270 = vmatprep.mubr.bf16.mxu0 0
  %271 = vmatmul.mubr.bf16.gmra.mxu0 %v156
  %v272 = vpop.f32.mrf.mxu0
  %v273 = vadd.f32 %v50, %v272
  %v274 = vpop.f32.mrf.mxu0
  %v275 = vpop.f32.mrf.mxu0
  %v276 = vadd.f32 %v50, %v275
  %v277 = vpop.f32.mrf.mxu0
  %278 = vmatprep.mubr.bf16.mxu0 0
  %279 = vmatmul.mubr.bf16.gmra.mxu0 %v159
  %v280 = vpop.f32.mrf.mxu0
  %v281 = vadd.f32 %v50, %v280
  %v282 = vpop.f32.mrf.mxu0
  %v283 = vpop.f32.mrf.mxu0
  %v284 = vadd.f32 %v50, %v283
  %v285 = vpop.f32.mrf.mxu0
  %286 = vmatprep.mubr.bf16.mxu0 0
  %287 = vmatmul.mubr.bf16.gmra.mxu0 %v162
  %v288 = vpop.f32.mrf.mxu0
  %v289 = vadd.f32 %v50, %v288
  %v290 = vpop.f32.mrf.mxu0
  %v291 = vpop.f32.mrf.mxu0
  %v292 = vadd.f32 %v50, %v291
  %v293 = vpop.f32.mrf.mxu0
  %294 = vmatprep.mubr.bf16.mxu0 0
  %295 = vmatmul.mubr.bf16.gmra.mxu0 %v165
  %v296 = vpop.f32.mrf.mxu0
  %v297 = vadd.f32 %v50, %v296
  %v298 = vpop.f32.mrf.mxu0
  %v299 = vpop.f32.mrf.mxu0
  %v300 = vadd.f32 %v50, %v299
  %v301 = vpop.f32.mrf.mxu0
  %302 = vmatprep.mubr.bf16.mxu0 0
  %303 = vmatmul.mubr.bf16.gmra.mxu0 %v168
  %v304 = vpop.f32.mrf.mxu0
  %v305 = vadd.f32 %v50, %v304
  %v306 = vpop.f32.mrf.mxu0
  %v307 = vpop.f32.mrf.mxu0
  %v308 = vpop.f32.mrf.mxu0
  %309 = vdwg.mxu0
  %vm310 = vcmask 261120
  %311 = vst.msk [vmem:[%s3] sm:$0xff] %vm310, %v209
  %312 = vst.msk [vmem:[%s3 + $0x8] sm:$0xff] %vm310, %v212
  %313 = vst.msk [vmem:[%s3 + $0x10] sm:$0xff] %vm310, %v217
  %314 = vst.msk [vmem:[%s3 + $0x18] sm:$0xff] %vm310, %v220
  %315 = vst.msk [vmem:[%s3 + $0x20] sm:$0xff] %vm310, %v225
  %316 = vst.msk [vmem:[%s3 + $0x28] sm:$0xff] %vm310, %v228
  %317 = vst.msk [vmem:[%s3 + $0x30] sm:$0xff] %vm310, %v233
  %318 = vst.msk [vmem:[%s3 + $0x38] sm:$0xff] %vm310, %v236
  %319 = vst.msk [vmem:[%s3 + $0x40] sm:$0xff] %vm310, %v241
  %320 = vst.msk [vmem:[%s3 + $0x48] sm:$0xff] %vm310, %v244
  %321 = vst.msk [vmem:[%s3 + $0x50] sm:$0xff] %vm310, %v249
  %322 = vst.msk [vmem:[%s3 + $0x58] sm:$0xff] %vm310, %v252
  %323 = vst.msk [vmem:[%s3 + $0x60] sm:$0xff] %vm310, %v257
  %324 = vst.msk [vmem:[%s3 + $0x68] sm:$0xff] %vm310, %v260
  %325 = vst.msk [vmem:[%s3 + $0x70] sm:$0xff] %vm310, %v265
  %326 = vst.msk [vmem:[%s3 + $0x78] sm:$0xff] %vm310, %v268
  %327 = vst.msk [vmem:[%s3 + $0x80] sm:$0xff] %vm310, %v273
  %328 = vst.msk [vmem:[%s3 + $0x88] sm:$0xff] %vm310, %v276
  %329 = vst.msk [vmem:[%s3 + $0x90] sm:$0xff] %vm310, %v281
  %330 = vst.msk [vmem:[%s3 + $0x98] sm:$0xff] %vm310, %v284
  %331 = vst.msk [vmem:[%s3 + $0xa0] sm:$0xff] %vm310, %v289
  %332 = vst.msk [vmem:[%s3 + $0xa8] sm:$0xff] %vm310, %v292
  %333 = vst.msk [vmem:[%s3 + $0xb0] sm:$0xff] %vm310, %v297
  %334 = vst.msk [vmem:[%s3 + $0xb8] sm:$0xff] %vm310, %v300
  %335 = vst.msk [vmem:[%s3 + $0xc0] sm:$0xff] %vm310, %v305
  // Predicated region
  $region14: #{tpu_custom_call.1} parent=0 // pred_check
    _
  $region15: #{tpu_custom_call.1} parent=0 // pred_check_branch
    %337 = sbr.rel (0) target = $region17
  $region16: #{tpu_custom_call.1} parent=0 // pred_region
    _
  $region17: #{tpu_custom_call.1} parent=0 // pred_fallthru
    _
  // Predicated region
  $region18: #{tpu_custom_call.1} parent=0 // pred_check
    _
  $region19: #{tpu_custom_call.1} parent=0 // pred_check_branch
    %339 = sbr.rel (0) target = $region21
  $region20: #{tpu_custom_call.1} parent=0 // pred_region
    _
  $region21: #{tpu_custom_call.1} parent=0 // pred_fallthru
    _

</llo_original>
